<compile_context>
chip_gen: v5e
topology: v5e:2x2
jax: 0.10.0
libtpu: 0.0.40
codegen_flags: <defaults>
</compile_context>

<pallas_src>
import functools

import jax
import jax.numpy as jnp
from jax.experimental import pallas as pl
from jax.experimental.pallas import tpu as pltpu


def _free_energy_kernel(packed_ref, out_ref, *, inv_b):
    # packed_ref: (5, B*z_dim) f32 in VMEM
    #   row 0: eta0 = nat_params[:, :, 0] flattened
    #   row 1: eta1 = nat_params[:, :, 1] flattened
    #   row 2: T0   = T[:, 0, :]          flattened
    #   row 3: T1   = T[:, 1, :]          flattened
    #   row 4: log_jacobians zero-padded to B*z_dim
    # out_ref: (3,) f32 in SMEM -> [log_normalizer, neg_trace, neg_log_det]
    p = packed_ref[...]

    eta0 = p[0:1, :]
    eta1 = p[1:2, :]

    # trace term: sum_{i,j} eta0*T0 + eta1*T1  (one elementwise mul over 2 rows,
    # one cross-lane reduction; deliberately NOT routed through the MXU).
    sum_traces = jnp.sum(p[0:2, :] * p[2:4, :])

    # fused log-normalizer: single reduction, exact divide (no approx vrcp).
    log_normalizer = jnp.sum(
        -0.5 * jnp.log(jnp.abs(eta0)) - 0.25 * (eta1 * eta1) / eta0
    ) * inv_b

    neg_trace = -sum_traces * inv_b
    neg_log_det = -jnp.sum(p[4:5, :]) * inv_b

    out_ref[0] = log_normalizer
    out_ref[1] = neg_trace
    out_ref[2] = neg_log_det


def free_energy_bound(T, nat_params, log_jacobians):
    """T: (B, 2, z_dim), nat_params: (B, z_dim, 2), log_jacobians: (B,)."""
    B, z_dim, two = nat_params.shape
    assert two == 2 and T.shape == (B, 2, z_dim)
    n = B * z_dim
    f32 = jnp.float32

    # Build ONE lane-dense slab (5, B*z_dim); for B*z_dim == 128 this is exactly
    # five full 128-lane rows -> a single unmasked DMA into VMEM.
    nat_rows = jnp.transpose(nat_params.astype(f32), (2, 0, 1)).reshape(2, n)  # eta0,eta1
    t_rows = jnp.transpose(T.astype(f32), (1, 0, 2)).reshape(2, n)             # T0,T1
    lj_row = jnp.pad(log_jacobians.astype(f32).reshape(1, B), ((0, 0), (0, n - B)))
    packed = jnp.concatenate([nat_rows, t_rows, lj_row], axis=0)               # (5, n)

    kernel = functools.partial(_free_energy_kernel, inv_b=1.0 / B)

    cost = pl.CostEstimate(
        flops=8 * n,            # muls/adds/divide per element, plus reductions
        transcendentals=n,      # one log per element of eta0
        bytes_accessed=packed.size * 4 + 3 * 4,
    )

    out = pl.pallas_call(
        kernel,
        out_shape=jax.ShapeDtypeStruct((3,), jnp.float32),
        in_specs=[pl.BlockSpec(memory_space=pltpu.MemorySpace.VMEM)],
        out_specs=pl.BlockSpec(memory_space=pltpu.MemorySpace.SMEM),
        cost_estimate=cost,
    )(packed)

    return out[0], out[1], out[2]


def _reference(T, nat_params, log_jacobians):
    B = nat_params.shape[0]
    sum_lj = jnp.sum(log_jacobians)
    sum_traces = jnp.sum(
        jnp.trace(jnp.einsum("bij,bjk->bik", nat_params, T), axis1=-2, axis2=-1)
    )
    avg_traces = sum_traces / B
    log_normalizer = -0.5 * jnp.sum(jnp.log(jnp.abs(nat_params[:, :, 0]))) / B
    log_normalizer -= jnp.sum(nat_params[:, :, 1] ** 2 / (4 * nat_params[:, :, 0])) / B
    return log_normalizer, -avg_traces, -sum_lj / B


if __name__ == "__main__":
    # args = {'latent_dim': 16, 'aux_dim': 8}  -> x_dim = z_dim = 16
    B, z_dim = 8, 16

    key = jax.random.PRNGKey(0)
    k1, k2, k3, k4 = jax.random.split(key, 4)

    # Sufficient statistics T(z) = [z, z^2] laid out as (B, 2, z_dim).
    z = jax.random.normal(k1, (B, z_dim), dtype=jnp.float32)
    T = jnp.stack([z, z * z], axis=1)                                  # (B, 2, z_dim)

    # Natural params: first column negative (keeps |.| away from 0), second free.
    eta0 = -(1.0 + jnp.abs(jax.random.normal(k2, (B, z_dim), jnp.float32)))
    eta1 = jax.random.normal(k3, (B, z_dim), dtype=jnp.float32)
    nat_params = jnp.stack([eta0, eta1], axis=-1)                      # (B, z_dim, 2)

    log_jacobians = jax.random.normal(k4, (B,), dtype=jnp.float32)

    out = free_energy_bound(T, nat_params, log_jacobians)
    out = jax.block_until_ready(out)

    ref = _reference(T, nat_params, log_jacobians)
    for o, r in zip(out, ref):
        assert jnp.allclose(o, r, rtol=1e-5, atol=1e-5), (o, r)

    print("KERNEL_OK")
</pallas_src>

<mosaic_0001>
module attributes {stable_mosaic.version = 11 : i64} {
  func.func @_free_energy_kernel(%arg0: memref<5x128xf32, #tpu.memory_space<vmem>>, %arg1: memref<3xf32, #tpu.memory_space<smem>>) attributes {dimension_semantics = [], scalar_prefetch = 0 : i64, scratch_operands = 0 : i64, tpu.core_type = #tpu.core_type<tc>} {
    %c0 = arith.constant 0 : index
    %c0_0 = arith.constant 0 : index
    %0 = vector.load %arg0[%c0, %c0_0] : memref<5x128xf32, #tpu.memory_space<vmem>>, vector<5x128xf32>
    %1 = vector.extract_strided_slice %0 {offsets = [0, 0], sizes = [1, 128], strides = [1, 1]} : vector<5x128xf32> to vector<1x128xf32>
    %2 = vector.extract_strided_slice %0 {offsets = [1, 0], sizes = [1, 128], strides = [1, 1]} : vector<5x128xf32> to vector<1x128xf32>
    %3 = vector.extract_strided_slice %0 {offsets = [0, 0], sizes = [2, 128], strides = [1, 1]} : vector<5x128xf32> to vector<2x128xf32>
    %4 = vector.extract_strided_slice %0 {offsets = [2, 0], sizes = [2, 128], strides = [1, 1]} : vector<5x128xf32> to vector<2x128xf32>
    %5 = arith.mulf %3, %4 : vector<2x128xf32>
    %6 = vector.shape_cast %5 : vector<2x128xf32> to vector<1x2x128xf32>
    %cst = arith.constant dense<0.000000e+00> : vector<1xf32>
    %7 = vector.multi_reduction <add>, %6, %cst [1, 2] : vector<1x2x128xf32> to vector<1xf32>
    %8 = vector.shape_cast %7 : vector<1xf32> to vector<1x1x1xf32>
    %9 = vector.extract %8[0, 0, 0] : f32 from vector<1x1x1xf32>
    %10 = math.absf %1 : vector<1x128xf32>
    %11 = math.log %10 : vector<1x128xf32>
    %cst_1 = arith.constant -5.000000e-01 : f32
    %12 = vector.broadcast %cst_1 : f32 to vector<1x128xf32>
    %13 = arith.mulf %12, %11 : vector<1x128xf32>
    %14 = arith.mulf %2, %2 : vector<1x128xf32>
    %cst_2 = arith.constant 2.500000e-01 : f32
    %15 = vector.broadcast %cst_2 : f32 to vector<1x128xf32>
    %16 = arith.mulf %15, %14 : vector<1x128xf32>
    %17 = arith.divf %16, %1 : vector<1x128xf32>
    %18 = arith.subf %13, %17 : vector<1x128xf32>
    %19 = vector.shape_cast %18 : vector<1x128xf32> to vector<1x1x128xf32>
    %cst_3 = arith.constant dense<0.000000e+00> : vector<1xf32>
    %20 = vector.multi_reduction <add>, %19, %cst_3 [1, 2] : vector<1x1x128xf32> to vector<1xf32>
    %21 = vector.shape_cast %20 : vector<1xf32> to vector<1x1x1xf32>
    %22 = vector.extract %21[0, 0, 0] : f32 from vector<1x1x1xf32>
    %cst_4 = arith.constant 1.250000e-01 : f32
    %23 = arith.mulf %22, %cst_4 : f32
    %cst_5 = arith.constant 0.000000e+00 : f32
    %24 = arith.subf %cst_5, %9 : f32
    %cst_6 = arith.constant 1.250000e-01 : f32
    %25 = arith.mulf %24, %cst_6 : f32
    %26 = vector.extract_strided_slice %0 {offsets = [4, 0], sizes = [1, 128], strides = [1, 1]} : vector<5x128xf32> to vector<1x128xf32>
    %27 = vector.shape_cast %26 : vector<1x128xf32> to vector<1x1x128xf32>
    %cst_7 = arith.constant dense<0.000000e+00> : vector<1xf32>
    %28 = vector.multi_reduction <add>, %27, %cst_7 [1, 2] : vector<1x1x128xf32> to vector<1xf32>
    %29 = vector.shape_cast %28 : vector<1xf32> to vector<1x1x1xf32>
    %30 = vector.extract %29[0, 0, 0] : f32 from vector<1x1x1xf32>
    %cst_8 = arith.constant 0.000000e+00 : f32
    %31 = arith.subf %cst_8, %30 : f32
    %cst_9 = arith.constant 1.250000e-01 : f32
    %32 = arith.mulf %31, %cst_9 : f32
    %c0_10 = arith.constant 0 : index
    %33 = memref.load %arg1[%c0_10] : memref<3xf32, #tpu.memory_space<smem>>
    memref.store %23, %arg1[%c0_10] : memref<3xf32, #tpu.memory_space<smem>>
    %c1 = arith.constant 1 : index
    %34 = memref.load %arg1[%c1] : memref<3xf32, #tpu.memory_space<smem>>
    memref.store %25, %arg1[%c1] : memref<3xf32, #tpu.memory_space<smem>>
    %c2 = arith.constant 2 : index
    %35 = memref.load %arg1[%c2] : memref<3xf32, #tpu.memory_space<smem>>
    memref.store %32, %arg1[%c2] : memref<3xf32, #tpu.memory_space<smem>>
    return
  }
}

</mosaic_0001>

<llo_original>
// kernel: tpu_custom_call.1
$region0: #{tpu_custom_call.1}
  #allocation0 [shape = 'u32[]', space=smem, size = 0x4, offset = 0x4, fixed_abs, tag = 'smem constant byte address 0x4 - core index']
  #allocation1 [shape = 'u32[72,128]{1,0:T(1,128)}', space=vmem, size = 0x9000, scoped, tag = 'internal scratch']
  %s0 = inlined_call_operand.hbm [shape: f32[5,128], index: 0, kind: input, shape index: {}]
  %s1 = inlined_call_operand.hbm [shape: f32[3], index: 1, kind: output, shape index: {}]
  %s2 = sld [smem:[#allocation0]]
  $region18: #{tpu_custom_call.1} parent=0
    _
  %s4 = ssub.s32 1, %s2
  %s5 = scalar_select 0, %s4, %s2
  $region1: #{tpu_custom_call.1} parent=0
    #allocation2 [shape = 'u8[4096]{0}', space=vmem, size = 0x1000, scoped, tag = 'input window, operand 0, single buffered']
    #allocation3 [shape = 's32[1]{0}', space=sflag, size = 0x4, scoped, tag = 'scoped memory for tpu_custom_call.1']
    #allocation4 [shape = 's32[1]{0}', space=sflag, size = 0x4, scoped, tag = 'scoped memory for tpu_custom_call.1']
    #allocation5 [shape = 'u8[512]{0}', space=smem, size = 0x200, scoped, tag = 'output window, operand 0, single buffered']
    %6 = vsyncpa [#allocation3], 0
    %7 = vsyncpa [#allocation4], 0
    // Predicated region
    $region2: #{tpu_custom_call.1} parent=1 // pred_check
      _
    $region3: #{tpu_custom_call.1} parent=1 // pred_check_branch
      %9 = sbr.rel (0) target = $region5
    $region4: #{tpu_custom_call.1} parent=1 // pred_region
      %11 = vsyncadd [#allocation3], 0
      %s13 = sshll.u32 %s0, 4
      %s14 = int_to_ptr.hbm [resolvable:$true] %s13
      %s15 = sshll.u32 [#allocation2], 4
      %s16 = int_to_ptr.vmem [resolvable:$true] %s15
      %18 = dma.hbm_to_vmem [thread:$0]  %s14, 128, %s16, [#allocation3]
    $region5: #{tpu_custom_call.1} parent=1 // pred_fallthru
      _
    // Predicated region
    $region6: #{tpu_custom_call.1} parent=1 // pred_check
      _
    $region7: #{tpu_custom_call.1} parent=1 // pred_check_branch
      %20 = sbr.rel (0) target = $region9
    $region8: #{tpu_custom_call.1} parent=1 // pred_region
      %22 = dma.done [#allocation3], 128
    $region9: #{tpu_custom_call.1} parent=1 // pred_fallthru
      _
    %v23 = vld [vmem:[#allocation2] sm:$0x1f]
    %v25 = vrot.slane %v23, 2
    %v27 = vmul.f32 %v23, %v25
    %vm28 = vcmask 1041408
    %v29 = vsel %vm28, %v27, 0.0
    %30 = vadd.xlane.f32.xlu0 %v29
    %v31 = vpop.xlane.xlu0 %30
    %v32 = vrot.slane %v31, 4
    %v33 = vadd.f32 %v31, %v32
    %v34 = vrot.slane %v33, 2
    %v35 = vadd.f32 %v33, %v34
    %v36 = vrot.slane %v35, 1
    %v37 = vadd.f32 %v35, %v36
    %s38 = vtos %v37
    %v39 = vand.u32 2147483647, %v23
    %v40 = vlog2.pop %v39
    %v41 = vmul.f32 %v40, 0.6931472
    %v42 = vmul.f32 %v41, -0.5
    %v43 = vmul.f32 %v23, %v23
    %v44 = vmul.f32 %v43, 0.25
    %v45 = vrot.slane %v23, 7
    %v47 = vrcp.pop %v45
    %v48 = vmul.f32 %v45, %v47
    %v49 = vsub.f32 1.0, %v48
    %v50 = vmul.f32 %v47, %v49
    %v51 = vadd.f32 %v47, %v50
    %vm52 = vweird.f32 %v45
    %vm53 = vweird.f32 %v47
    %vm54 = vmor %vm52, %vm53
    %v55 = vsel %vm54, %v47, %v51
    %v56 = vand.u32 2147483647, %v45
    %vm57 = vcmp.eq.f32.partialorder %v56, 8.507059e+37
    %v58 = vand.u32 %v45, 2147483648
    %v59 = vor.u32 1.1754944e-38, %v58
    %v60 = vsel %vm57, %v59, %v55
    %v61 = vmul.f32 %v44, %v60
    %v63 = vrot.slane %v61, 1
    %v65 = vsub.f32 %v42, %v63
    %vm66 = vcmask 1040384
    %v67 = vsel %vm66, %v65, 0.0
    %68 = vadd.xlane.f32.xlu0 %v67
    %v69 = vpop.xlane.xlu0 %68
    %v70 = vrot.slane %v69, 4
    %v71 = vadd.f32 %v69, %v70
    %v72 = vrot.slane %v71, 2
    %v73 = vadd.f32 %v71, %v72
    %v74 = vrot.slane %v73, 1
    %v75 = vadd.f32 %v73, %v74
    %s76 = vtos %v75
    %s77 = smul.f32 %s76, 0.125
    %s78 = ssub.f32 0.0, %s38
    %s79 = smul.f32 %s78, 0.125
    %v80 = vrot.slane %v23, 4
    %v82 = vsel %vm66, %v80, 0.0
    %83 = vadd.xlane.f32.xlu0 %v82
    %v84 = vpop.xlane.xlu0 %83
    %v85 = vrot.slane %v84, 4
    %v86 = vadd.f32 %v84, %v85
    %v87 = vrot.slane %v86, 2
    %v88 = vadd.f32 %v86, %v87
    %v89 = vrot.slane %v88, 1
    %v90 = vadd.f32 %v88, %v89
    %s91 = vtos %v90
    %s92 = ssub.f32 0.0, %s91
    %s93 = smul.f32 %s92, 0.125
    %s94 = scalar_lea.smem [#allocation5], 0
    %95 = sst [smem:[%s94]] %s77
    %s96 = scalar_lea.smem [#allocation5], 1
    %97 = sst [smem:[%s96]] %s79
    %s98 = scalar_lea.smem [#allocation5], 2
    %99 = sst [smem:[%s98]] %s93
    // Predicated region
    $region10: #{tpu_custom_call.1} parent=1 // pred_check
      _
    $region11: #{tpu_custom_call.1} parent=1 // pred_check_branch
      %101 = sbr.rel (0) target = $region13
    $region12: #{tpu_custom_call.1} parent=1 // pred_region
      %103 = vsyncadd [#allocation4], 0
      %s105 = sshll.u32 %s1, 4
      %s106 = int_to_ptr.hbm [resolvable:$true] %s105
      %108 = dma.smem_to_hbm [#allocation5], 16, %s106, [#allocation4]
    $region13: #{tpu_custom_call.1} parent=1 // pred_fallthru
      _
    // Predicated region
    $region14: #{tpu_custom_call.1} parent=1 // pred_check
      _
    $region15: #{tpu_custom_call.1} parent=1 // pred_check_branch
      %110 = sbr.rel (0) target = $region17
    $region16: #{tpu_custom_call.1} parent=1 // pred_region
      %112 = dma.done [#allocation4], 16
    $region17: #{tpu_custom_call.1} parent=1 // pred_fallthru
      _
    %113 = sfence
    %114 = vsyncpa [#allocation3], 1
    %115 = vsyncpa [#allocation4], 1

</llo_original>
